<compile_context>
chip_gen: v7x
topology: tpu7x:2x2x1
jax: 0.10.0
libtpu: 0.0.40
codegen_flags: <defaults>
</compile_context>

<pallas_src>
import jax
import jax.numpy as jnp
from jax import lax
from jax.experimental import pallas as pl
from jax.experimental.pallas import tpu as pltpu


def _round_up(x, m):
    return (x + m - 1) // m * m


def _cdiv(a, b):
    return -(-a // b)


def _make_fused_tcn_kernel(num_layers, ksize, dilations, cum_pads, seq_len,
                           tile_l, halo, chans_p, c_last):
    """Builds the fused TCN kernel body for a fixed (static) layer config."""
    total_pad = cum_pads[-1]
    c0_p = chans_p[0]

    def kernel(xa_ref, xb_ref, w_ref, b_ref, o_ref, act_a, act_b):
        tile_start = pl.program_id(1) * tile_l   # first final-output column here

        # Assemble layer-0 input window (tile + right halo) in the act scratch.
        # x was zero-padded in HBM, so this already realizes layer 0's padding.
        act_a[:c0_p, :tile_l] = xa_ref[0]
        act_a[:c0_p, tile_l:tile_l + halo] = xb_ref[0, :, :halo]

        bufs = (act_a, act_b)
        width = tile_l + halo
        for i in range(num_layers):
            d = dilations[i]
            p = (ksize - 1) * d
            out_w = width - p
            ci = chans_p[i]
            co = chans_p[i + 1]
            src = bufs[i % 2]

            # K accumulating MXU matmuls; taps read straight from the resident
            # activation ref (no im2col scratch round-trip), f32 accumulation.
            acc = jnp.dot(w_ref[i * ksize, :co, :ci], src[:ci, :out_w],
                          preferred_element_type=jnp.float32)
            for j in range(1, ksize):
                acc += jnp.dot(w_ref[i * ksize + j, :co, :ci],
                               src[:ci, j * d:j * d + out_w],
                               preferred_element_type=jnp.float32)
            acc = jnp.maximum(acc + b_ref[i, :co], 0.0)      # bias + ReLU in f32

            if i == num_layers - 1:
                # Store only this tile's lane-dense columns; Pallas masks the
                # ragged last block's HBM writeback (out last dim == L_out).
                o_ref[0] = acc[:c_last, :tile_l].astype(o_ref.dtype)
            else:
                # Columns outside layer i's true output range [0, len_i) must be
                # zero: they act as the NEXT layer's conv zero-padding (layers
                # are fused in VMEM).  Interior tiles are fully valid, so the
                # select is gated on tile position.
                dst = bufs[(i + 1) % 2]
                left_off = total_pad - cum_pads[i]
                len_i = seq_len + cum_pads[i]
                col0 = tile_start - left_off
                needs_mask = jnp.logical_or(col0 < 0, col0 + out_w > len_i)

                @pl.when(needs_mask)
                def _():
                    pos = col0 + lax.broadcasted_iota(jnp.int32, (1, out_w), 1)
                    valid = jnp.logical_and(pos >= 0, pos < len_i)
                    dst[:co, :out_w] = jnp.where(valid, acc, 0.0).astype(dst.dtype)

                @pl.when(jnp.logical_not(needs_mask))
                def _():
                    dst[:co, :out_w] = acc.astype(dst.dtype)

            width = out_w

    return kernel


def temporal_conv_net(x, params, kernel_size=2, tile_l=512,
                      compute_dtype=jnp.bfloat16,
                      vmem_budget_bytes=48 * 1024 * 1024):
    """Fused TemporalConvNet forward (inference: Dropout == identity).

    x: (N, C_in, L); params: list of (w (C_out, C_in, K), b (C_out,)).
    Returns (N, C_last, L + sum_i (K-1)*2**i), matching the PyTorch module.
    On v5e/v6e (128 MiB VMEM) tile_l=1024 / vmem_budget_bytes=96 MiB is a good
    setting; the 48 MiB default is chosen to fit v7x's 64 MiB physical VMEM.
    """
    N, C_in, L = x.shape
    K = kernel_size
    num_layers = len(params)
    assert num_layers >= 1
    dilations = [2 ** i for i in range(num_layers)]
    pads = [(K - 1) * d for d in dilations]
    cum_pads, s = [], 0
    for p in pads:
        s += p
        cum_pads.append(s)
    total_pad = cum_pads[-1]
    L_out = L + total_pad

    # Channel counts padded to 16 (bf16 sublane tile); realistic TCN widths
    # (>=128) are already MXU-friendly.
    chans = [C_in] + [w.shape[0] for (w, _) in params]
    chans_p = [_round_up(c, 16) for c in chans]
    c0_p = chans_p[0]
    c_max_p = max(chans_p)
    max_ci_p = max(chans_p[:-1])
    max_co_p = max(chans_p[1:])
    c_last = chans[-1]

    cbytes = jnp.dtype(compute_dtype).itemsize
    obytes = jnp.dtype(x.dtype).itemsize

    # --- tile geometry, derived from an explicit VMEM budget ------------------
    halo = _round_up(max(total_pad, 1), 128)     # one-sided right halo (lane-rounded)

    def vmem_estimate(tl):
        inp = 2 * 2 * c0_p * tl * cbytes                          # tile + halo blocks, 2x buffered
        wts = 2 * num_layers * K * max_co_p * max_ci_p * cbytes   # packed weights, 2x buffered
        bias = 2 * num_layers * max_co_p * 128 * 4                # f32 bias, lane-padded
        outb = 2 * _round_up(c_last, 8) * tl * obytes             # output blocks
        scr = 2 * c_max_p * (tl + halo) * cbytes                  # ping-pong act scratch
        return inp + wts + bias + outb + scr

    tl = min(_round_up(max(tile_l, 128), 128), _round_up(L_out, 128))
    if N == 1:
        # Keep at least 2 L tiles so both v7x TensorCores get work.
        tl = min(tl, _round_up(_cdiv(L_out, 2), 128))
    tl = max(tl, halo, 128)                      # halo must fit in one next-tile block
    while tl - 128 >= max(halo, 128) and vmem_estimate(tl) > int(0.9 * vmem_budget_bytes):
        tl -= 128
    nt = _cdiv(L_out, tl)
    Lx = (nt + 1) * tl                           # next-tile halo fetch stays in bounds

    # --- operand prep: one pad+cast pass, weights/biases packed ---------------
    x_p = jnp.pad(x, ((0, 0), (0, c0_p - C_in),
                      (total_pad, Lx - L - total_pad))).astype(compute_dtype)

    w_blocks, b_rows = [], []
    for (w, b) in params:
        co, ci = w.shape[0], w.shape[1]
        wt = jnp.transpose(w, (2, 0, 1))         # (K, C_out, C_in), one plane per tap
        wt = jnp.pad(wt, ((0, 0), (0, max_co_p - co), (0, max_ci_p - ci)))
        w_blocks.append(wt)
        b_rows.append(jnp.pad(b, (0, max_co_p - co)))
    w_all = jnp.concatenate(w_blocks, axis=0).astype(compute_dtype)   # (L*K, max_co_p, max_ci_p)
    b_all = jnp.stack(b_rows, axis=0).reshape(num_layers, max_co_p, 1).astype(jnp.float32)

    kernel = _make_fused_tcn_kernel(num_layers, K, dilations, cum_pads, L,
                                    tl, halo, chans_p, c_last)

    in_specs = [
        # This output tile's worth of input columns ...
        pl.BlockSpec((1, c0_p, tl), lambda n, l: (n, 0, l)),
        # ... plus the next tile (its first `halo` columns are the right halo).
        pl.BlockSpec((1, c0_p, tl), lambda n, l: (n, 0, l + 1)),
        # Grid-invariant packed weights / biases: one full-array block each.
        pl.BlockSpec(w_all.shape, lambda n, l: (0, 0, 0)),
        pl.BlockSpec(b_all.shape, lambda n, l: (0, 0, 0)),
    ]

    out = pl.pallas_call(
        kernel,
        out_shape=jax.ShapeDtypeStruct((N, c_last, L_out), x.dtype),
        grid_spec=pltpu.PrefetchScalarGridSpec(
            num_scalar_prefetch=0,
            grid=(N, nt),
            in_specs=in_specs,
            out_specs=pl.BlockSpec((1, c_last, tl), lambda n, l: (n, 0, l)),
            scratch_shapes=[
                pltpu.VMEM((c_max_p, tl + halo), compute_dtype),   # act ping
                pltpu.VMEM((c_max_p, tl + halo), compute_dtype),   # act pong
            ],
        ),
        compiler_params=pltpu.CompilerParams(
            dimension_semantics=("parallel", "parallel"),
            vmem_limit_bytes=int(max(vmem_budget_bytes,
                                     vmem_estimate(tl) + (4 << 20))),
        ),
    )(x_p, x_p, w_all, b_all)
    return out


def init_params(key, num_inputs, num_channels, kernel_size=2):
    """Deterministic PyTorch-default-style (uniform) init for each Conv1d."""
    params = []
    in_c = num_inputs
    for out_c in num_channels:
        key, kw, kb = jax.random.split(key, 3)
        bound = 1.0 / float(in_c * kernel_size) ** 0.5
        w = jax.random.uniform(kw, (out_c, in_c, kernel_size), jnp.float32,
                               minval=-bound, maxval=bound)
        b = jax.random.uniform(kb, (out_c,), jnp.float32,
                               minval=-bound, maxval=bound)
        params.append((w, b))
        in_c = out_c
    return params


def reference(x, params, kernel_size=2, quantize=None):
    """Pure-JAX reference via lax.conv_general_dilated (matches PyTorch Conv1d).

    With quantize=jnp.bfloat16 the operands and intermediate activations are
    rounded through bf16 exactly like the Pallas kernel (f32 accumulation).
    """
    if quantize is not None:
        cast = lambda t: t.astype(quantize).astype(jnp.float32)
    else:
        cast = lambda t: t
    out = cast(x)
    n = len(params)
    for i, (w, b) in enumerate(params):
        d = 2 ** i
        pad = (kernel_size - 1) * d
        y = jax.lax.conv_general_dilated(
            out, cast(w), window_strides=(1,), padding=[(pad, pad)],
            rhs_dilation=(d,), dimension_numbers=("NCH", "OIH", "NCH"))
        y = jnp.maximum(y + b[None, :, None], 0.0)
        out = cast(y) if i < n - 1 else y
    return out


if __name__ == "__main__":
    key = jax.random.PRNGKey(0)
    kx, kp, kx2, kp2, kx3, kp3 = jax.random.split(key, 6)

    # Config 1: consistent with the module — batch=2, num_inputs=4, L=16,
    # two TCN levels of 8 channels, kernel_size=2.
    num_inputs, num_channels, ksize = 4, [8, 8], 2
    x = jax.random.normal(kx, (2, num_inputs, 16), jnp.float32)
    params = init_params(kp, num_inputs, num_channels, ksize)

    out = jax.block_until_ready(temporal_conv_net(x, params, kernel_size=ksize))

    # Tight check vs. a reference with the same bf16 operand rounding
    # (kernel accumulates in f32), then a loose sanity check vs. pure f32.
    ref_q = reference(x, params, kernel_size=ksize, quantize=jnp.bfloat16)
    assert out.shape == ref_q.shape, (out.shape, ref_q.shape)
    assert jnp.allclose(out, ref_q, atol=1e-3, rtol=1e-3)
    ref_f32 = reference(x, params, kernel_size=ksize)
    assert jnp.allclose(out, ref_f32, atol=1e-1, rtol=1e-1)

    # Config 2: multiple L tiles, 3 levels, kernel_size=3, odd channel counts —
    # exercises halo fetch, edge masking and channel padding paths.
    num_inputs2, num_channels2, ksize2 = 3, [5, 7, 6], 3
    x2 = jax.random.normal(kx2, (1, num_inputs2, 300), jnp.float32)
    params2 = init_params(kp2, num_inputs2, num_channels2, ksize2)
    out2 = jax.block_until_ready(
        temporal_conv_net(x2, params2, kernel_size=ksize2, tile_l=128))
    ref2 = reference(x2, params2, kernel_size=ksize2, quantize=jnp.bfloat16)
    assert out2.shape == ref2.shape, (out2.shape, ref2.shape)
    assert jnp.allclose(out2, ref2, atol=2e-3, rtol=2e-3)

    # Config 3: long sequence with fully-interior tiles — exercises the gated
    # (mask-free) pl.when branch and the ragged final output block.
    num_inputs3, num_channels3, ksize3 = 4, [8, 8], 2
    x3 = jax.random.normal(kx3, (1, num_inputs3, 600), jnp.float32)
    params3 = init_params(kp3, num_inputs3, num_channels3, ksize3)
    out3 = jax.block_until_ready(
        temporal_conv_net(x3, params3, kernel_size=ksize3, tile_l=128))
    ref3 = reference(x3, params3, kernel_size=ksize3, quantize=jnp.bfloat16)
    assert out3.shape == ref3.shape, (out3.shape, ref3.shape)
    assert jnp.allclose(out3, ref3, atol=2e-3, rtol=2e-3)

    print("KERNEL_OK")
</pallas_src>

<mosaic_0001>
module attributes {stable_mosaic.version = 11 : i64} {
  func.func @kernel(%arg0: i32, %arg1: i32, %arg2: memref<1x16x128xbf16, #tpu.memory_space<vmem>>, %arg3: memref<1x16x128xbf16, #tpu.memory_space<vmem>>, %arg4: memref<4x16x16xbf16, #tpu.memory_space<vmem>>, %arg5: memref<2x16x1xf32, #tpu.memory_space<vmem>>, %arg6: memref<1x8x128xf32, #tpu.memory_space<vmem>>, %arg7: memref<16x256xbf16, #tpu.memory_space<vmem>>, %arg8: memref<16x256xbf16, #tpu.memory_space<vmem>>) attributes {dimension_semantics = [#tpu.dimension_semantics<parallel>, #tpu.dimension_semantics<parallel>], iteration_bounds = array<i64: 2, 1>, scalar_prefetch = 0 : i64, scratch_operands = 2 : i64, tpu.core_type = #tpu.core_type<tc>, window_params = [{transform_indices = @transform_0, window_bounds = array<i64: 1, 16, 128>}, {transform_indices = @transform_1, window_bounds = array<i64: 1, 16, 128>}, {pipeline_mode = #tpu.pipeline_mode<synchronous>, transform_indices = @transform_2, window_bounds = array<i64: 4, 16, 16>}, {pipeline_mode = #tpu.pipeline_mode<synchronous>, transform_indices = @transform_3, window_bounds = array<i64: 2, 16, 1>}, {transform_indices = @transform_4, window_bounds = array<i64: 1, 8, 128>}]} {
    %c128_i32 = arith.constant 128 : i32
    %0 = arith.muli %arg1, %c128_i32 : i32
    %c0 = arith.constant 0 : index
    %c0_0 = arith.constant 0 : index
    %c0_1 = arith.constant 0 : index
    %1 = vector.load %arg2[%c0, %c0_0, %c0_1] : memref<1x16x128xbf16, #tpu.memory_space<vmem>>, vector<1x16x128xbf16>
    %2 = vector.shape_cast %1 : vector<1x16x128xbf16> to vector<16x128xbf16>
    %c0_2 = arith.constant 0 : index
    %c0_3 = arith.constant 0 : index
    %3 = vector.load %arg7[%c0_2, %c0_3] : memref<16x256xbf16, #tpu.memory_space<vmem>>, vector<16x128xbf16>
    tpu.vector_store %arg7[%c0_2, %c0_3], %2 {strides = array<i32>} : memref<16x256xbf16, #tpu.memory_space<vmem>>, vector<16x128xbf16>,
    %c0_4 = arith.constant 0 : index
    %c0_5 = arith.constant 0 : index
    %c0_6 = arith.constant 0 : index
    %4 = vector.load %arg3[%c0_4, %c0_5, %c0_6] : memref<1x16x128xbf16, #tpu.memory_space<vmem>>, vector<1x16x128xbf16>
    %5 = vector.shape_cast %4 : vector<1x16x128xbf16> to vector<16x128xbf16>
    %c0_7 = arith.constant 0 : index
    %c128 = arith.constant 128 : index
    %6 = vector.load %arg7[%c0_7, %c128] : memref<16x256xbf16, #tpu.memory_space<vmem>>, vector<16x128xbf16>
    tpu.vector_store %arg7[%c0_7, %c128], %5 {strides = array<i32>} : memref<16x256xbf16, #tpu.memory_space<vmem>>, vector<16x128xbf16>,
    %c0_8 = arith.constant 0 : index
    %c0_9 = arith.constant 0 : index
    %c0_10 = arith.constant 0 : index
    %7 = vector.load %arg4[%c0_8, %c0_9, %c0_10] : memref<4x16x16xbf16, #tpu.memory_space<vmem>>, vector<1x16x16xbf16>
    %8 = vector.shape_cast %7 : vector<1x16x16xbf16> to vector<16x16xbf16>
    %c0_11 = arith.constant 0 : index
    %c0_12 = arith.constant 0 : index
    %9 = vector.load %arg7[%c0_11, %c0_12] : memref<16x256xbf16, #tpu.memory_space<vmem>>, vector<16x255xbf16>
    %cst = arith.constant dense<0.000000e+00> : vector<16x255xf32>
    %10 = tpu.matmul %8, %9, %cst {dimension_numbers = #tpu.dot_dimension_numbers<[1], [0], [0], [1], [0, 0, 1, 1], [], []>} : vector<16x16xbf16>, vector<16x255xbf16>, vector<16x255xf32> -> vector<16x255xf32>
    %c1 = arith.constant 1 : index
    %c0_13 = arith.constant 0 : index
    %c0_14 = arith.constant 0 : index
    %11 = vector.load %arg4[%c1, %c0_13, %c0_14] : memref<4x16x16xbf16, #tpu.memory_space<vmem>>, vector<1x16x16xbf16>
    %12 = vector.shape_cast %11 : vector<1x16x16xbf16> to vector<16x16xbf16>
    %c0_15 = arith.constant 0 : index
    %c1_16 = arith.constant 1 : index
    %13 = vector.load %arg7[%c0_15, %c1_16] : memref<16x256xbf16, #tpu.memory_space<vmem>>, vector<16x255xbf16>
    %cst_17 = arith.constant dense<0.000000e+00> : vector<16x255xf32>
    %14 = tpu.matmul %12, %13, %cst_17 {dimension_numbers = #tpu.dot_dimension_numbers<[1], [0], [0], [1], [0, 0, 1, 1], [], []>} : vector<16x16xbf16>, vector<16x255xbf16>, vector<16x255xf32> -> vector<16x255xf32>
    %15 = arith.addf %10, %14 : vector<16x255xf32>
    %c0_18 = arith.constant 0 : index
    %c0_19 = arith.constant 0 : index
    %c0_20 = arith.constant 0 : index
    %16 = vector.load %arg5[%c0_18, %c0_19, %c0_20] : memref<2x16x1xf32, #tpu.memory_space<vmem>>, vector<1x16x1xf32>
    %17 = vector.shape_cast %16 : vector<1x16x1xf32> to vector<16x1xf32>
    %18 = vector.broadcast %17 : vector<16x1xf32> to vector<16x255xf32>
    %19 = arith.addf %15, %18 : vector<16x255xf32>
    %cst_21 = arith.constant 0.000000e+00 : f32
    %20 = vector.broadcast %cst_21 : f32 to vector<16x255xf32>
    %21 = arith.maximumf %19, %20 : vector<16x255xf32>
    %c2_i32 = arith.constant 2 : i32
    %22 = arith.subi %0, %c2_i32 : i32
    %c0_i32 = arith.constant 0 : i32
    %23 = arith.cmpi slt, %22, %c0_i32 : i32
    %c255_i32 = arith.constant 255 : i32
    %24 = arith.addi %22, %c255_i32 : i32
    %c17_i32 = arith.constant 17 : i32
    %25 = arith.cmpi sgt, %24, %c17_i32 : i32
    %26 = arith.ori %23, %25 : i1
    %27 = arith.extui %26 : i1 to i32
    %c0_i32_22 = arith.constant 0 : i32
    %28 = arith.cmpi ne, %27, %c0_i32_22 : i32
    scf.if %28 {
      %51 = tpu.iota {dimensions = array<i32: 1>} : vector<1x255xi32>
      %52 = vector.broadcast %22 : i32 to vector<1x255xi32>
      %53 = arith.addi %52, %51 : vector<1x255xi32>
      %c0_i32_41 = arith.constant 0 : i32
      %54 = vector.broadcast %c0_i32_41 : i32 to vector<1x255xi32>
      %55 = arith.cmpi sge, %53, %54 : vector<1x255xi32>
      %c17_i32_42 = arith.constant 17 : i32
      %56 = vector.broadcast %c17_i32_42 : i32 to vector<1x255xi32>
      %57 = arith.cmpi slt, %53, %56 : vector<1x255xi32>
      %58 = arith.andi %55, %57 : vector<1x255xi1>
      %cst_43 = arith.constant 0.000000e+00 : f32
      %59 = vector.shape_cast %58 : vector<1x255xi1> to vector<1x255xi1>
      %60 = vector.broadcast %59 : vector<1x255xi1> to vector<16x255xi1>
      %61 = vector.broadcast %cst_43 : f32 to vector<16x255xf32>
      %62 = arith.select %60, %21, %61 : vector<16x255xi1>, vector<16x255xf32>
      %63 = arith.truncf %62 : vector<16x255xf32> to vector<16x255xbf16>
      %c0_44 = arith.constant 0 : index
      %c0_45 = arith.constant 0 : index
      %64 = vector.load %arg8[%c0_44, %c0_45] : memref<16x256xbf16, #tpu.memory_space<vmem>>, vector<16x255xbf16>
      tpu.vector_store %arg8[%c0_44, %c0_45], %63 {strides = array<i32>} : memref<16x256xbf16, #tpu.memory_space<vmem>>, vector<16x255xbf16>,
    } else {
    }
    %true = arith.constant true
    %29 = arith.xori %26, %true : i1
    %30 = arith.extui %29 : i1 to i32
    %c0_i32_23 = arith.constant 0 : i32
    %31 = arith.cmpi ne, %30, %c0_i32_23 : i32
    scf.if %31 {
      %51 = arith.truncf %21 : vector<16x255xf32> to vector<16x255xbf16>
      %c0_41 = arith.constant 0 : index
      %c0_42 = arith.constant 0 : index
      %52 = vector.load %arg8[%c0_41, %c0_42] : memref<16x256xbf16, #tpu.memory_space<vmem>>, vector<16x255xbf16>
      tpu.vector_store %arg8[%c0_41, %c0_42], %51 {strides = array<i32>} : memref<16x256xbf16, #tpu.memory_space<vmem>>, vector<16x255xbf16>,
    } else {
    }
    %c2 = arith.constant 2 : index
    %c0_24 = arith.constant 0 : index
    %c0_25 = arith.constant 0 : index
    %32 = vector.load %arg4[%c2, %c0_24, %c0_25] : memref<4x16x16xbf16, #tpu.memory_space<vmem>>, vector<1x16x16xbf16>
    %33 = vector.shape_cast %32 : vector<1x16x16xbf16> to vector<16x16xbf16>
    %c0_26 = arith.constant 0 : index
    %c0_27 = arith.constant 0 : index
    %34 = vector.load %arg8[%c0_26, %c0_27] : memref<16x256xbf16, #tpu.memory_space<vmem>>, vector<16x253xbf16>
    %cst_28 = arith.constant dense<0.000000e+00> : vector<16x253xf32>
    %35 = tpu.matmul %33, %34, %cst_28 {dimension_numbers = #tpu.dot_dimension_numbers<[1], [0], [0], [1], [0, 0, 1, 1], [], []>} : vector<16x16xbf16>, vector<16x253xbf16>, vector<16x253xf32> -> vector<16x253xf32>
    %c3 = arith.constant 3 : index
    %c0_29 = arith.constant 0 : index
    %c0_30 = arith.constant 0 : index
    %36 = vector.load %arg4[%c3, %c0_29, %c0_30] : memref<4x16x16xbf16, #tpu.memory_space<vmem>>, vector<1x16x16xbf16>
    %37 = vector.shape_cast %36 : vector<1x16x16xbf16> to vector<16x16xbf16>
    %c0_31 = arith.constant 0 : index
    %c2_32 = arith.constant 2 : index
    %38 = vector.load %arg8[%c0_31, %c2_32] : memref<16x256xbf16, #tpu.memory_space<vmem>>, vector<16x253xbf16>
    %cst_33 = arith.constant dense<0.000000e+00> : vector<16x253xf32>
    %39 = tpu.matmul %37, %38, %cst_33 {dimension_numbers = #tpu.dot_dimension_numbers<[1], [0], [0], [1], [0, 0, 1, 1], [], []>} : vector<16x16xbf16>, vector<16x253xbf16>, vector<16x253xf32> -> vector<16x253xf32>
    %40 = arith.addf %35, %39 : vector<16x253xf32>
    %c1_34 = arith.constant 1 : index
    %c0_35 = arith.constant 0 : index
    %c0_36 = arith.constant 0 : index
    %41 = vector.load %arg5[%c1_34, %c0_35, %c0_36] : memref<2x16x1xf32, #tpu.memory_space<vmem>>, vector<1x16x1xf32>
    %42 = vector.shape_cast %41 : vector<1x16x1xf32> to vector<16x1xf32>
    %43 = vector.broadcast %42 : vector<16x1xf32> to vector<16x253xf32>
    %44 = arith.addf %40, %43 : vector<16x253xf32>
    %cst_37 = arith.constant 0.000000e+00 : f32
    %45 = vector.broadcast %cst_37 : f32 to vector<16x253xf32>
    %46 = arith.maximumf %44, %45 : vector<16x253xf32>
    %47 = vector.extract_strided_slice %46 {offsets = [0, 0], sizes = [8, 128], strides = [1, 1]} : vector<16x253xf32> to vector<8x128xf32>
    %c0_38 = arith.constant 0 : index
    %c0_39 = arith.constant 0 : index
    %c0_40 = arith.constant 0 : index
    %48 = vector.load %arg6[%c0_38, %c0_39, %c0_40] : memref<1x8x128xf32, #tpu.memory_space<vmem>>, vector<1x8x128xf32>
    %49 = vector.shape_cast %48 : vector<1x8x128xf32> to vector<8x128xf32>
    %50 = vector.shape_cast %47 : vector<8x128xf32> to vector<1x8x128xf32>
    tpu.vector_store %arg6[%c0_38, %c0_39, %c0_40], %50 {strides = array<i32>} : memref<1x8x128xf32, #tpu.memory_space<vmem>>, vector<1x8x128xf32>,
    return
  }
  func.func @transform_0(%arg0: i32, %arg1: i32) -> (i32, i32, i32) {
    %c0_i32 = arith.constant 0 : i32
    %c0_i32_0 = arith.constant 0 : i32
    return %arg0, %c0_i32, %arg1 : i32, i32, i32
  }
  func.func @transform_1(%arg0: i32, %arg1: i32) -> (i32, i32, i32) {
    %c1_i32 = arith.constant 1 : i32
    %0 = arith.addi %arg1, %c1_i32 : i32
    %c0_i32 = arith.constant 0 : i32
    %c0_i32_0 = arith.constant 0 : i32
    return %arg0, %c0_i32, %0 : i32, i32, i32
  }
  func.func @transform_2(%arg0: i32, %arg1: i32) -> (i32, i32, i32) {
    %c0_i32 = arith.constant 0 : i32
    %c0_i32_0 = arith.constant 0 : i32
    %c0_i32_1 = arith.constant 0 : i32
    %c0_i32_2 = arith.constant 0 : i32
    return %c0_i32, %c0_i32_0, %c0_i32_1 : i32, i32, i32
  }
  func.func @transform_3(%arg0: i32, %arg1: i32) -> (i32, i32, i32) {
    %c0_i32 = arith.constant 0 : i32
    %c0_i32_0 = arith.constant 0 : i32
    %c0_i32_1 = arith.constant 0 : i32
    %c0_i32_2 = arith.constant 0 : i32
    return %c0_i32, %c0_i32_0, %c0_i32_1 : i32, i32, i32
  }
  func.func @transform_4(%arg0: i32, %arg1: i32) -> (i32, i32, i32) {
    %c0_i32 = arith.constant 0 : i32
    %c0_i32_0 = arith.constant 0 : i32
    return %arg0, %c0_i32, %arg1 : i32, i32, i32
  }
}

</mosaic_0001>

<llo_original>
// kernel: tpu_custom_call.1
$region0: #{tpu_custom_call.1}
  #allocation0 [shape = 'u32[]', space=smem, size = 0x4, offset = 0x4, fixed_abs, tag = 'smem constant byte address 0x4 - core index']
  #allocation1 [shape = 'u32[144,128]{1,0:T(1,128)}', space=vmem, size = 0x12000, scoped, tag = 'internal scratch']
  #allocation2 [shape = 'bf16[16,256]{1,0:T(16,128)(2,1)}', space=vmem, size = 0x2000, scoped, tag = 'scratch operand']
  #allocation3 [shape = 'bf16[16,256]{1,0:T(16,128)(2,1)}', space=vmem, size = 0x2000, scoped, tag = 'scratch operand']
  %s0 = inlined_call_operand.vmem [shape: bf16[2,16,256], index: 0, kind: input, shape index: {}]
  %s1 = inlined_call_operand.hbm [shape: bf16[2,16,256], index: 1, kind: input, shape index: {}]
  %s2 = inlined_call_operand.hbm [shape: bf16[4,16,16], index: 2, kind: input, shape index: {}]
  %s3 = inlined_call_operand.vmem [shape: f32[2,16,1], index: 3, kind: input, shape index: {}]
  %s4 = inlined_call_operand.hbm [shape: f32[2,8,19], index: 4, kind: output, shape index: {}]
  %s5 = sld [smem:[#allocation0]]
  $region106: #{tpu_custom_call.1} parent=0
    _
  %s7 = ssub.s32 1, %s5
  %s8 = scalar_select 0, %s7, %s5
  $region1: #{tpu_custom_call.1} parent=0
    #allocation4 [shape = 'u8[8192]{0}', space=vmem, size = 0x2000, scoped, tag = 'input window, operand 0']
    #allocation5 [shape = 'u8[8192]{0}', space=vmem, size = 0x2000, scoped, tag = 'input window, operand 1']
    #allocation6 [shape = 's32[2]{0}', space=sflag, size = 0x8, scoped, tag = 'scoped memory for tpu_custom_call.1']
    #allocation7 [shape = 's32[2]{0}', space=sflag, size = 0x8, scoped, tag = 'scoped memory for tpu_custom_call.1']
    #allocation8 [shape = 'u8[16384]{0}', space=vmem, size = 0x4000, scoped, tag = 'input window, operand 2, single buffered']
    #allocation9 [shape = 's32[1]{0}', space=sflag, size = 0x4, scoped, tag = 'scoped memory for tpu_custom_call.1']
    #allocation10 [shape = 'u8[8192]{0}', space=vmem, size = 0x2000, scoped, tag = 'output window, operand 0']
    %9 = vsyncpa [#allocation6], 0
    %s10 = scalar_lea.sflag [#allocation6], 1
    %11 = vsyncpa %s10, 0
    %12 = vsyncpa [#allocation9], 0
    %13 = vsyncpa [#allocation7], 0
    %s14 = scalar_lea.sflag [#allocation7], 1
    %15 = vsyncpa %s14, 0
    loop: start=0, step=1, limit=4
    $region2: #{tpu_custom_call.1} parent=1 // loop_pre_header
      _
    $region3: #{tpu_custom_call.1} parent=1 // loop_header
      %s17 = sphi 0, %s21
      %p18 = scmp.ge.s32.totalorder %s17, 4
      %s24 = sphi 0, %s36
      %s25 = sphi 0, %s32
      %s26 = sphi 0, %s24
      %s27 = sphi 0, %s25
      %s28 = sphi 0, %s26
      %s29 = sphi 0, %s27
      %s41 = sphi 0, %s43
      %s44 = sphi 0, %s41
      %s45 = sphi 0, %s44
      %s61 = sphi 0, %s45
      %s71 = sphi 0, %s73
      %s74 = sphi 0, %s71
      %s75 = sphi 0, %s74
      %s91 = sphi 0, %s75
      %s95 = sphi 0, %s95
      %s97 = sphi 0, %s95
      %s98 = sphi 0, %s97
      %s112 = sphi 0, %s98
      %s116 = sphi 0, %s116
      %s118 = sphi 0, %s116
      %s119 = sphi 0, %s118
      %s133 = sphi 0, %s119
      %s141 = sphi 0, %s143
      %s144 = sphi 0, %s141
      %s145 = sphi 0, %s144
      %s161 = sphi 0, %s145
    $region4: #{tpu_custom_call.1} parent=1 // loop_header_branch
      %20 = sbr.rel (%p18) target = $region8
    $region5: #{tpu_custom_call.1} parent=1 // loop_body
      %s22 = ssub.s32 %s17, 1
      %s23 = ssub.s32 %s17, 2
      %s30 = sadd.s32 1, %s25
      %p31 = scmp.ge.s32.totalorder %s30, 1
      %s32 = scalar_select %p31, 0, %s30
      %s33 = sadd.s32 1, %s24
      %s34 = scalar_select %p31, %s33, %s24
      %p35 = scmp.ge.s32.totalorder %s34, 2
      %s36 = scalar_select %p35, 0, %s34
      %s37 = ssub.s32 %s24, %s36
      %s38 = ssub.s32 %s25, %s32
      %s39 = sor.u32 %s37, %s38
      %p40 = scmp.eq.s32.totalorder %s39, 0
      %s42 = sadd.s32 %s41, 1
      %s43 = scalar_select %p40, %s41, %s42
      %p46 = pneg %p40
      %p47 = scmp.eq.s32.totalorder %s17, 1
      %p48 = por %p46, %p47
      %p49 = scmp.ne.s32.totalorder %s41, %s44
      %p50 = scmp.eq.s32.totalorder %s17, 0
      %p51 = por %p49, %p50
      %p52 = scmp.ne.s32.totalorder %s41, %s44
      %p53 = scmp.eq.s32.totalorder %s22, 1
      %p54 = por %p52, %p53
      %p55 = scmp.ne.s32.totalorder %s44, %s45
      %p56 = scmp.eq.s32.totalorder %s22, 0
      %p57 = por %p55, %p56
      %p58 = scmp.ne.s32.totalorder %s44, %s45
      %p59 = scmp.eq.s32.totalorder %s23, 1
      %p60 = por %p58, %p59
      %p62 = scmp.ne.s32.totalorder %s45, %s61
      %p63 = scmp.eq.s32.totalorder %s23, 0
      %p64 = por %p62, %p63
      %s65 = sadd.s32 %s25, 1
      %s66 = sadd.s32 %s32, 1
      %s67 = ssub.s32 %s24, %s36
      %s68 = ssub.s32 %s65, %s66
      %s69 = sor.u32 %s67, %s68
      %p70 = scmp.eq.s32.totalorder %s69, 0
      %s72 = sadd.s32 %s71, 1
      %s73 = scalar_select %p70, %s71, %s72
      %p76 = pneg %p70
      %p77 = scmp.eq.s32.totalorder %s17, 1
      %p78 = por %p76, %p77
      %p79 = scmp.ne.s32.totalorder %s71, %s74
      %p80 = scmp.eq.s32.totalorder %s17, 0
      %p81 = por %p79, %p80
      %p82 = scmp.ne.s32.totalorder %s71, %s74
      %p83 = scmp.eq.s32.totalorder %s22, 1
      %p84 = por %p82, %p83
      %p85 = scmp.ne.s32.totalorder %s74, %s75
      %p86 = scmp.eq.s32.totalorder %s22, 0
      %p87 = por %p85, %p86
      %p88 = scmp.ne.s32.totalorder %s74, %s75
      %p89 = scmp.eq.s32.totalorder %s23, 1
      %p90 = por %p88, %p89
      %p92 = scmp.ne.s32.totalorder %s75, %s91
      %p93 = scmp.eq.s32.totalorder %s23, 0
      %p94 = por %p92, %p93
      %s96 = sadd.s32 %s95, 1
      %p99 = scmp.eq.s32.totalorder %s17, 1
      %p100 = scmp.ne.s32.totalorder %s95, %s97
      %p101 = scmp.eq.s32.totalorder %s17, 0
      %p102 = por %p100, %p101
      %p103 = scmp.ne.s32.totalorder %s95, %s97
      %p104 = scmp.eq.s32.totalorder %s22, 1
      %p105 = por %p103, %p104
      %p106 = scmp.ne.s32.totalorder %s97, %s98
      %p107 = scmp.eq.s32.totalorder %s22, 0
      %p108 = por %p106, %p107
      %p109 = scmp.ne.s32.totalorder %s97, %s98
      %p110 = scmp.eq.s32.totalorder %s23, 1
      %p111 = por %p109, %p110
      %p113 = scmp.ne.s32.totalorder %s98, %s112
      %p114 = scmp.eq.s32.totalorder %s23, 0
      %p115 = por %p113, %p114
      %s117 = sadd.s32 %s116, 1
      %p120 = scmp.eq.s32.totalorder %s17, 1
      %p121 = scmp.ne.s32.totalorder %s116, %s118
      %p122 = scmp.eq.s32.totalorder %s17, 0
      %p123 = por %p121, %p122
      %p124 = scmp.ne.s32.totalorder %s116, %s118
      %p125 = scmp.eq.s32.totalorder %s22, 1
      %p126 = por %p124, %p125
      %p127 = scmp.ne.s32.totalorder %s118, %s119
      %p128 = scmp.eq.s32.totalorder %s22, 0
      %p129 = por %p127, %p128
      %p130 = scmp.ne.s32.totalorder %s118, %s119
      %p131 = scmp.eq.s32.totalorder %s23, 1
      %p132 = por %p130, %p131
      %p134 = scmp.ne.s32.totalorder %s119, %s133
      %p135 = scmp.eq.s32.totalorder %s23, 0
      %p136 = por %p134, %p135
      %s137 = ssub.s32 %s24, %s36
      %s138 = ssub.s32 %s25, %s32
      %s139 = sor.u32 %s137, %s138
      %p140 = scmp.eq.s32.totalorder %s139, 0
      %s142 = sadd.s32 %s141, 1
      %s143 = scalar_select %p140, %s141, %s142
      %p146 = pneg %p140
      %p147 = scmp.eq.s32.totalorder %s17, 1
      %p148 = por %p146, %p147
      %p149 = scmp.ne.s32.totalorder %s141, %s144
      %p150 = scmp.eq.s32.totalorder %s17, 0
      %p151 = por %p149, %p150
      %p152 = scmp.ne.s32.totalorder %s141, %s144
      %p153 = scmp.eq.s32.totalorder %s22, 1
      %p154 = por %p152, %p153
      %p155 = scmp.ne.s32.totalorder %s144, %s145
      %p156 = scmp.eq.s32.totalorder %s22, 0
      %p157 = por %p155, %p156
      %p158 = scmp.ne.s32.totalorder %s144, %s145
      %p159 = scmp.eq.s32.totalorder %s23, 1
      %p160 = por %p158, %p159
      %p162 = scmp.ne.s32.totalorder %s145, %s161
      %p163 = scmp.eq.s32.totalorder %s23, 0
      %p164 = por %p162, %p163
      %p165 = scmp.le.s32.totalorder 1, %s17
      %p166 = scmp.lt.s32.totalorder %s17, 3
      %p167 = pnand %p165, %p166
      %p168 = pneg %p167
      // Predicated region
      $region9: #{tpu_custom_call.1} parent=5 // pred_check
        _
      $region10: #{tpu_custom_call.1} parent=5 // pred_check_branch
        %170 = sbr.rel (%p167) target = $region12
      $region11: #{tpu_custom_call.1} parent=5 // pred_region
        %s171 = ssub.s32 %s17, 1
        // Predicated region
        $region13: #{tpu_custom_call.1} parent=11 // pred_check
          %p172 = pneg %p108
        $region14: #{tpu_custom_call.1} parent=11 // pred_check_branch
          %174 = sbr.rel (%p172) target = $region16
        $region15: #{tpu_custom_call.1} parent=11 // pred_region
          %s176 = ssub.s32 512, 512
          %177 = vsyncadd [#allocation9], %s176
          %s178 = sshll.u32 [#allocation8], 4
          %s179 = int_to_ptr.vmem [resolvable:$true] %s178
          %184 = dma.hbm_to_vmem [thread:$0]  %s2, 512, %s179, [#allocation9], 64, 64, 4
        $region16: #{tpu_custom_call.1} parent=11 // pred_fallthru
          _
        // Predicated region
        $region17: #{tpu_custom_call.1} parent=11 // pred_check
          %p185 = pneg %p129
        $region18: #{tpu_custom_call.1} parent=11 // pred_check_branch
          %187 = sbr.rel (%p185) target = $region20
        $region19: #{tpu_custom_call.1} parent=11 // pred_region
          _
        $region20: #{tpu_custom_call.1} parent=11 // pred_fallthru
          _
      $region12: #{tpu_custom_call.1} parent=5 // pred_fallthru
        _
      %p188 = scmp.lt.s32.totalorder %s17, 2
      // Predicated region
      $region21: #{tpu_custom_call.1} parent=5 // pred_check
        %p189 = pneg %p188
      $region22: #{tpu_custom_call.1} parent=5 // pred_check_branch
        %191 = sbr.rel (%p189) target = $region24
      $region23: #{tpu_custom_call.1} parent=5 // pred_region
        // Predicated region
        $region25: #{tpu_custom_call.1} parent=23 // pred_check
          %p192 = pneg %p51
        $region26: #{tpu_custom_call.1} parent=23 // pred_check_branch
          %194 = sbr.rel (%p192) target = $region28
        $region27: #{tpu_custom_call.1} parent=23 // pred_region
          %s195 = sand.u32 %s41, 1
          %s196 = sand.u32 %s41, 1
          %s197 = smul.addr %s196, 8
          %s198 = scalar_lea.vmem [#allocation4], %s197
          %s199 = smul.addr %s24, 4
          %s200 = sadd.s32 %s25, %s199
          %s201 = smul.addr %s200, 4
          %s202 = scalar_lea.vmem %s0, %s201
          // Predicated region
          $region29: #{tpu_custom_call.1} parent=27 // pred_check
            _
          $region30: #{tpu_custom_call.1} parent=27 // pred_check_branch
            %204 = sbr.rel (0) target = $region32
          $region31: #{tpu_custom_call.1} parent=27 // pred_region
            // Predicated region
            $region33: #{tpu_custom_call.1} parent=31 // pred_check
              _
            $region34: #{tpu_custom_call.1} parent=31 // pred_check_branch
              %206 = sbr.rel target = $region36
            $region35: #{tpu_custom_call.1} parent=31 // pred_region
              // Predicated region
              $region48: #{tpu_custom_call.1} parent=35 // pred_check
                _
              $region49: #{tpu_custom_call.1} parent=35 // pred_check_branch
                %223 = sbr.rel (0) target = $region51
              $region50: #{tpu_custom_call.1} parent=35 // pred_region
                loop: start=0, step=1, limit=1
                $region52: #{tpu_custom_call.1} parent=50 // loop_pre_header
                  _
                $region53: #{tpu_custom_call.1} parent=50 // loop_header
                  %s225 = sphi 0, %s229
                  %p226 = scmp.ge.s32.totalorder %s225, 1
                  %s230 = sphi %s202, %s202
                  %s231 = sphi %s198, %s198
                $region54: #{tpu_custom_call.1} parent=50 // loop_header_branch
                  %228 = sbr.rel (%p226) target = $region58
                $region55: #{tpu_custom_call.1} parent=50 // loop_body
                  _
                $region56: #{tpu_custom_call.1} parent=50 // loop_footer
                  %s229 = sadd.s32 1, %s225
                $region57: #{tpu_custom_call.1} parent=50 // loop_footer_branch
                  %224 = sbr.rel target = $region53
                $region58: #{tpu_custom_call.1} parent=50 // loop_exit
                  _
                loop: start=0, step=1, limit=1
                $region59: #{tpu_custom_call.1} parent=50 // loop_pre_header
                  _
                $region60: #{tpu_custom_call.1} parent=50 // loop_header
                  %s234 = sphi 0, %s238
                  %p235 = scmp.ge.s32.totalorder %s234, 1
                  %s239 = sphi %s202, %s202
                  %s240 = sphi %s198, %s198
                $region61: #{tpu_custom_call.1} parent=50 // loop_header_branch
                  %237 = sbr.rel (%p235) target = $region65
                $region62: #{tpu_custom_call.1} parent=50 // loop_body
                  %v241 = vld [vmem:[%s239] sm:$0xf]
                  %242 = vst [vmem:[%s240] sm:$0xf] %v241
                  %v243 = vld [vmem:[%s239 + $0x8] sm:$0xf]
                  %244 = vst [vmem:[%s240 + $0x4] sm:$0xf] %v243
                $region63: #{tpu_custom_call.1} parent=50 // loop_footer
                  %s238 = sadd.s32 1, %s234
                $region64: #{tpu_custom_call.1} parent=50 // loop_footer_branch
                  %233 = sbr.rel target = $region60
                $region65: #{tpu_custom_call.1} parent=50 // loop_exit
                  _
              $region51: #{tpu_custom_call.1} parent=35 // pred_fallthru
                _
            $region36: #{tpu_custom_call.1} parent=31 // pred_fallthru
              _
            // Predicated region
            $region37: #{tpu_custom_call.1} parent=31 // pred_check
              _
            $region38: #{tpu_custom_call.1} parent=31 // pred_check_branch
              %208 = sbr.rel (0) target = $region40
            $region39: #{tpu_custom_call.1} parent=31 // pred_region
              loop: start=0, step=1, limit=1
              $region41: #{tpu_custom_call.1} parent=39 // loop_pre_header
                _
              $region42: #{tpu_custom_call.1} parent=39 // loop_header
                %s211 = sphi 0, %s215
                %p212 = scmp.ge.s32.totalorder %s211, 1
                %s216 = sphi %s202, %s202
                %s217 = sphi %s198, %s198
              $region43: #{tpu_custom_call.1} parent=39 // loop_header_branch
                %214 = sbr.rel (%p212) target = $region47
              $region44: #{tpu_custom_call.1} parent=39 // loop_body
                %v218 = vld [vmem:[%s216] sm:$0xf]
                %219 = vst [vmem:[%s217] sm:$0xf] %v218
                %v220 = vld [vmem:[%s216 + $0x8] sm:$0xf]
                %221 = vst [vmem:[%s217 + $0x4] sm:$0xf] %v220
              $region45: #{tpu_custom_call.1} parent=39 // loop_footer
                %s215 = sadd.s32 1, %s211
              $region46: #{tpu_custom_call.1} parent=39 // loop_footer_branch
                %210 = sbr.rel target = $region42
              $region47: #{tpu_custom_call.1} parent=39 // loop_exit
                _
            $region40: #{tpu_custom_call.1} parent=31 // pred_fallthru
              _
          $region32: #{tpu_custom_call.1} parent=27 // pred_fallthru
            _
          %245 = vnop
        $region28: #{tpu_custom_call.1} parent=23 // pred_fallthru
          _
        // Predicated region
        $region66: #{tpu_custom_call.1} parent=23 // pred_check
          %p246 = pneg %p81
        $region67: #{tpu_custom_call.1} parent=23 // pred_check_branch
          %248 = sbr.rel (%p246) target = $region69
        $region68: #{tpu_custom_call.1} parent=23 // pred_region
          %s249 = sand.u32 %s71, 1
          %s250 = scalar_lea.sflag [#allocation6], %s249
          %s251 = sand.u32 %s71, 1
          %s252 = smul.addr %s251, 8
          %s253 = scalar_lea.vmem [#allocation5], %s252
          %s254 = sadd.s32 %s25, 1
          %s256 = ssub.s32 128, 128
          %257 = vsyncadd %s250, %s256
          %s258 = smul.addr %s24, 4
          %s259 = sadd.s32 %s254, %s258
          %s260 = smul.addr %s259, 64
          %s261 = scalar_lea.hbm %s1, %s260
          %s262 = sshll.u32 %s253, 4
          %s263 = int_to_ptr.vmem [resolvable:$true] %s262
          %268 = dma.hbm_to_vmem [thread:$0]  %s261, 128, %s263, %s250, 128, 64, 4
        $region69: #{tpu_custom_call.1} parent=23 // pred_fallthru
          _
      $region24: #{tpu_custom_call.1} parent=5 // pred_fallthru
        _
      %p269 = scmp.le.s32.totalorder 1, %s17
      %p270 = scmp.lt.s32.totalorder %s17, 3
      %p271 = pnand %p269, %p270
      %p272 = pneg %p271
      // Predicated region
      $region70: #{tpu_custom_call.1} parent=5 // pred_check
        _
      $region71: #{tpu_custom_call.1} parent=5 // pred_check_branch
        %274 = sbr.rel (%p271) target = $region73
      $region72: #{tpu_custom_call.1} parent=5 // pred_region
        %s275 = ssub.s32 %s17, 1
        %s276 = sand.u32 %s44, 1
        %s277 = sand.u32 %s44, 1
        %s278 = smul.addr %s277, 8
        %s279 = scalar_lea.vmem [#allocation4], %s278
        // Predicated region
        $region74: #{tpu_custom_call.1} parent=72 // pred_check
          %p280 = pneg %p57
        $region75: #{tpu_custom_call.1} parent=72 // pred_check_branch
          %282 = sbr.rel (%p280) target = $region77
        $region76: #{tpu_custom_call.1} parent=72 // pred_region
          _
        $region77: #{tpu_custom_call.1} parent=72 // pred_fallthru
          _
        %s283 = sand.u32 %s74, 1
        %s284 = scalar_lea.sflag [#allocation6], %s283
        %s285 = sand.u32 %s74, 1
        %s286 = smul.addr %s285, 8
        %s287 = scalar_lea.vmem [#allocation5], %s286
        // Predicated region
        $region78: #{tpu_custom_call.1} parent=72 // pred_check
          %p288 = pneg %p87
        $region79: #{tpu_custom_call.1} parent=72 // pred_check_branch
          %290 = sbr.rel (%p288) target = $region81
        $region80: #{tpu_custom_call.1} parent=72 // pred_region
          %291 = dma.done %s284, 128
        $region81: #{tpu_custom_call.1} parent=72 // pred_fallthru
          _
        // Predicated region
        $region82: #{tpu_custom_call.1} parent=72 // pred_check
          %p292 = pneg %p108
        $region83: #{tpu_custom_call.1} parent=72 // pred_check_branch
          %294 = sbr.rel (%p292) target = $region85
        $region84: #{tpu_custom_call.1} parent=72 // pred_region
          %295 = dma.done [#allocation9], 512
        $region85: #{tpu_custom_call.1} parent=72 // pred_fallthru
          _
        %s296 = sand.u32 %s44, 1
        %s297 = sand.u32 %s44, 1
        %s298 = smul.addr %s297, 8
        %s299 = scalar_lea.vmem [#allocation4], %s298
        %p300 = pneg %p57
        %p301 = pneg %p54
        %s302 = sand.u32 %s74, 1
        %s303 = scalar_lea.sflag [#allocation6], %s302
        %s304 = sand.u32 %s74, 1
        %s305 = smul.addr %s304, 8
        %s306 = scalar_lea.vmem [#allocation5], %s305
        %p307 = pneg %p87
        %p308 = pneg %p84
        %p309 = pneg %p108
        %p310 = pneg %p105
        %p311 = pneg %p129
        %p312 = pneg %p126
        %p313 = pneg %p157
        %p314 = pneg %p154
        %s315 = sand.u32 %s144, 1
        %s316 = scalar_lea.sflag [#allocation7], %s315
        %s317 = sand.u32 %s144, 1
        %s318 = smul.addr %s317, 8
        %s319 = scalar_lea.vmem [#allocation10], %s318
        %s320 = sadd.s32 %s27, 1
        %s322 = smul.u32 %s27, 128
        %v323 = vld [vmem:[%s279] sm:$0xf]
        %v324 = vld [vmem:[%s279 + $0x4] sm:$0xf]
        %v327 = vunpack.c.l.b16 %v323
        %v328 = vunpack.c.l.b16 %v324
        %v329 = vpack.c.b16 %v328, %v327
        %331 = vst [vmem:[#allocation2] sm:$0xff] %v329
        %v332 = vld [vmem:[%s287] sm:$0xf]
        %v333 = vld [vmem:[%s287 + $0x4] sm:$0xf]
        %v336 = vunpack.c.l.b16 %v332
        %v337 = vunpack.c.l.b16 %v333
        %v338 = vpack.c.b16 %v337, %v336
        %340 = vst [vmem:[#allocation2 + $0x8] sm:$0xff] %v338
        %v341 = vld [vmem:[#allocation8] sm:$0xf]
        %v342 = vld [vmem:[#allocation8 + $0x4] sm:$0xf]
        %v343 = vld [vmem:[#allocation2] sm:$0xff]
        %v344 = vld [vmem:[#allocation2 + $0x8] sm:$0xff]
        %s345 = scalar_lea.vmem [#allocation8], 8
        %v346 = vld [vmem:[%s345] sm:$0xf]
        %v347 = vld [vmem:[%s345 + $0x4] sm:$0xf]
        %v350 = vunpack.c.l.b16 %v346
        %v351 = vunpack.c.l.b16 %v347
        %v352 = vpack.c.b16 %v351, %v350
        %355 = vrot.lane.b32.xlu0 %v343, 127
        %v356 = vpop.permute.xlu0 %355
        %357 = vrot.lane.b32.xlu0 %v344, 127
        %v358 = vpop.permute.xlu0 %357
        %vm359 = vcmask 1039360
        %v360 = vsel %vm359, %v356, %v358
        %vm363 = vcmask 130048
        %v365 = vsel %vm363, %v352, 0
        %367 = vmatprep.subr.bf16.mxu0 %v358
        %368 = vmatpush1.bf16.msra.mxu0 %v360
        %369 = vmatprep.subr.bf16.mxu0 0
        %370 = vmatpush1.bf16.msra.mxu0 0
        %371 = vmatprep.subr.bf16.mxu0 0
        %372 = vmatpush1.bf16.msra.mxu0 0
        %373 = vmatprep.subr.bf16.mxu0 0
        %374 = vmatpush1.bf16.msra.mxu0 0
        %375 = vmatprep.subr.bf16.mxu0 0
        %376 = vmatpush1.bf16.msra.mxu0 0
        %377 = vmatprep.subr.bf16.mxu0 0
        %378 = vmatpush1.bf16.msra.mxu0 0
        %379 = vmatprep.subr.bf16.mxu0 0
        %380 = vmatpush1.bf16.msra.mxu0 0
        %381 = vmatprep.subr.bf16.mxu0 0
        %382 = vmatpush1.bf16.msra.mxu0 0
        %383 = vmatprep.subr.bf16.mxu0 0
        %384 = vmatpush1.bf16.msra.mxu0 0
        %385 = vmatprep.subr.bf16.mxu0 0
        %386 = vmatpush1.bf16.msra.mxu0 0
        %387 = vmatprep.subr.bf16.mxu0 0
        %388 = vmatpush1.bf16.msra.mxu0 0
        %389 = vmatprep.subr.bf16.mxu0 0
        %390 = vmatpush1.bf16.msra.mxu0 0
        %391 = vmatprep.subr.bf16.mxu0 0
        %392 = vmatpush1.bf16.msra.mxu0 0
        %393 = vmatprep.subr.bf16.mxu0 0
        %394 = vmatpush1.bf16.msra.mxu0 0
        %395 = vmatprep.subr.bf16.mxu0 0
        %396 = vmatpush1.bf16.msra.mxu0 0
        %397 = vmatprep.subr.bf16.mxu0 0
        %398 = vmatpush1.bf16.msra.mxu0 0
        %399 = vmatprep.mubr.bf16.mxu0 0
        %400 = vmatmul.mubr.bf16.gmra.mrb[0].mxu0 %v365
        %v401 = vpop.f32.mrb[0].mxu0
        %v402 = vadd.f32 0.0, %v401
        %v403 = vpop.f32.mrb[0].mxu0
        %v404 = vadd.f32 0.0, %v403
        %v405 = vpop.f32.mrb[0].mxu0
        %v406 = vadd.f32 0.0, %v405
        %v407 = vpop.f32.mrb[0].mxu0
        %v408 = vadd.f32 0.0, %v407
        %409 = vdwg.mxu0
        %v412 = vunpack.c.l.b16 %v341
        %v413 = vunpack.c.l.b16 %v342
        %v414 = vpack.c.b16 %v413, %v412
        %v416 = vsel %vm363, %v414, 0
        %418 = vmatprep.subr.bf16.mxu0 %v344
        %419 = vmatpush1.bf16.msra.mxu0 %v343
        %420 = vmatprep.subr.bf16.mxu0 0
        %421 = vmatpush1.bf16.msra.mxu0 0
        %422 = vmatprep.subr.bf16.mxu0 0
        %423 = vmatpush1.bf16.msra.mxu0 0
        %424 = vmatprep.subr.bf16.mxu0 0
        %425 = vmatpush1.bf16.msra.mxu0 0
        %426 = vmatprep.subr.bf16.mxu0 0
        %427 = vmatpush1.bf16.msra.mxu0 0
        %428 = vmatprep.subr.bf16.mxu0 0
        %429 = vmatpush1.bf16.msra.mxu0 0
        %430 = vmatprep.subr.bf16.mxu0 0
        %431 = vmatpush1.bf16.msra.mxu0 0
        %432 = vmatprep.subr.bf16.mxu0 0
        %433 = vmatpush1.bf16.msra.mxu0 0
        %434 = vmatprep.subr.bf16.mxu0 0
        %435 = vmatpush1.bf16.msra.mxu0 0
        %436 = vmatprep.subr.bf16.mxu0 0
        %437 = vmatpush1.bf16.msra.mxu0 0
        %438 = vmatprep.subr.bf16.mxu0 0
        %439 = vmatpush1.bf16.msra.mxu0 0
        %440 = vmatprep.subr.bf16.mxu0 0
        %441 = vmatpush1.bf16.msra.mxu0 0
        %442 = vmatprep.subr.bf16.mxu0 0
        %443 = vmatpush1.bf16.msra.mxu0 0
        %444 = vmatprep.subr.bf16.mxu0 0
        %445 = vmatpush1.bf16.msra.mxu0 0
        %446 = vmatprep.subr.bf16.mxu0 0
        %447 = vmatpush1.bf16.msra.mxu0 0
        %448 = vmatprep.subr.bf16.mxu0 0
        %449 = vmatpush1.bf16.msra.mxu0 0
        %450 = vmatprep.mubr.bf16.mxu0 0
        %451 = vmatmul.mubr.bf16.gmra.mrb[0].mxu0 %v416
        %v452 = vpop.f32.mrb[0].mxu0
        %v453 = vadd.f32 %v402, %v452
        %v454 = vpop.f32.mrb[0].mxu0
        %v455 = vadd.f32 %v404, %v454
        %v456 = vpop.f32.mrb[0].mxu0
        %v457 = vadd.f32 %v406, %v456
        %v458 = vpop.f32.mrb[0].mxu0
        %v459 = vadd.f32 %v408, %v458
        %460 = vdwg.mxu0
        %v461 = vld [vmem:[%s3] sm:$0xff]
        %v462 = vld [vmem:[%s3 + $0x8] sm:$0xff]
        %464 = vset.pattern.permute.xlu0 0
        %465 = vperm.xlu0 %464, %v461
        %v466 = vpop.permute.xlu0 %465
        %469 = vset.pattern.permute.xlu0 0
        %470 = vperm.xlu0 %469, %v462
        %v471 = vpop.permute.xlu0 %470
        %v473 = vadd.f32 %v453, %v466
        %v474 = vadd.f32 %v455, %v466
        %v475 = vadd.f32 %v457, %v471
        %v476 = vadd.f32 %v459, %v471
        %v477 = vmax.f32 %v473, 0.0
        %v478 = vmax.f32 %v474, 0.0
        %v479 = vmax.f32 %v475, 0.0
        %v480 = vmax.f32 %v476, 0.0
        %s481 = ssub.s32 %s322, 2
        %p482 = scmp.lt.s32.totalorder %s481, 0
        %s483 = sadd.s32 %s322, 253
        %p484 = scmp.gt.s32.totalorder %s483, 17
        %p485 = por %p482, %p484
        // Predicated region
        $region86: #{tpu_custom_call.1} parent=72 // pred_check
          %p486 = pneg %p485
        $region87: #{tpu_custom_call.1} parent=72 // pred_check_branch
          %488 = sbr.rel (%p486) target = $region89
        $region88: #{tpu_custom_call.1} parent=72 // pred_region
          %v489 = vlaneseq
          %v490 = vand.u32 %v489, 127
          %v491 = vadd.s32 %v490, 128
          %v492 = vstv %s481
          %v493 = vadd.s32 %v492, %v490
          %v494 = vadd.s32 %v492, %v491
          %vm495 = vcmp.ge.s32.totalorder %v493, 0
          %vm496 = vcmp.ge.s32.totalorder %v494, 0
          %vm497 = vcmp.lt.s32.totalorder %v493, 17
          %vm498 = vcmp.lt.s32.totalorder %v494, 17
          %vm499 = vmand %vm495, %vm497
          %vm500 = vmand %vm496, %vm498
          %v501 = vsel %vm499, 1, 0
          %v502 = vsel %vm500, 1, 0
          %vm503 = vcmp.eq.s32.totalorder %v501, 1
          %vm504 = vcmp.eq.s32.totalorder %v502, 1
          %v505 = vsel %vm503, %v477, 0.0
          %v506 = vsel %vm504, %v478, 0.0
          %v507 = vsel %vm503, %v479, 0.0
          %v508 = vsel %vm504, %v480, 0.0
          %v509 = vpack.c.bf16 %v507, %v505
          %v510 = vpack.c.bf16 %v508, %v506
          %511 = vst [vmem:[#allocation3] sm:$0xff] %v509
          %vm512 = vcmask 1039360
          %513 = vst.msk [vmem:[#allocation3 + $0x8] sm:$0xff] %vm512, %v510
        $region89: #{tpu_custom_call.1} parent=72 // pred_fallthru
          _
        %p514 = pneg %p485
        // Predicated region
        $region90: #{tpu_custom_call.1} parent=72 // pred_check
          _
        $region91: #{tpu_custom_call.1} parent=72 // pred_check_branch
          %516 = sbr.rel (%p485) target = $region93
        $region92: #{tpu_custom_call.1} parent=72 // pred_region
          %v517 = vpack.c.bf16 %v479, %v477
          %v518 = vpack.c.bf16 %v480, %v478
          %519 = vst [vmem:[#allocation3] sm:$0xff] %v517
          %vm520 = vcmask 1039360
          %521 = vst.msk [vmem:[#allocation3 + $0x8] sm:$0xff] %vm520, %v518
        $region93: #{tpu_custom_call.1} parent=72 // pred_fallthru
          _
        %s522 = scalar_lea.vmem [#allocation8], 16
        %v523 = vld [vmem:[%s522] sm:$0xf]
        %v524 = vld [vmem:[%s522 + $0x4] sm:$0xf]
        %v525 = vld [vmem:[#allocation3] sm:$0xff]
        %v526 = vld [vmem:[#allocation3 + $0x8] sm:$0xff]
        %s527 = scalar_lea.vmem [#allocation8], 24
        %v528 = vld [vmem:[%s527] sm:$0xf]
        %v529 = vld [vmem:[%s527 + $0x4] sm:$0xf]
        %v532 = vunpack.c.l.b16 %v528
        %v533 = vunpack.c.l.b16 %v529
        %v534 = vpack.c.b16 %v533, %v532
        %537 = vrot.lane.b32.xlu0 %v525, 126
        %v538 = vpop.permute.xlu0 %537
        %539 = vrot.lane.b32.xlu0 %v526, 126
        %v540 = vpop.permute.xlu0 %539
        %vm541 = vcmask 1031168
        %v542 = vsel %vm541, %v538, %v540
        %v546 = vsel %vm363, %v534, 0
        %548 = vmatprep.subr.bf16.mxu0 %v540
        %549 = vmatpush1.bf16.msra.mxu0 %v542
        %550 = vmatprep.subr.bf16.mxu0 0
        %551 = vmatpush1.bf16.msra.mxu0 0
        %552 = vmatprep.subr.bf16.mxu0 0
        %553 = vmatpush1.bf16.msra.mxu0 0
        %554 = vmatprep.subr.bf16.mxu0 0
        %555 = vmatpush1.bf16.msra.mxu0 0
        %556 = vmatprep.subr.bf16.mxu0 0
        %557 = vmatpush1.bf16.msra.mxu0 0
        %558 = vmatprep.subr.bf16.mxu0 0
        %559 = vmatpush1.bf16.msra.mxu0 0
        %560 = vmatprep.subr.bf16.mxu0 0
        %561 = vmatpush1.bf16.msra.mxu0 0
        %562 = vmatprep.subr.bf16.mxu0 0
        %563 = vmatpush1.bf16.msra.mxu0 0
        %564 = vmatprep.subr.bf16.mxu0 0
        %565 = vmatpush1.bf16.msra.mxu0 0
        %566 = vmatprep.subr.bf16.mxu0 0
        %567 = vmatpush1.bf16.msra.mxu0 0
        %568 = vmatprep.subr.bf16.mxu0 0
        %569 = vmatpush1.bf16.msra.mxu0 0
        %570 = vmatprep.subr.bf16.mxu0 0
        %571 = vmatpush1.bf16.msra.mxu0 0
        %572 = vmatprep.subr.bf16.mxu0 0
        %573 = vmatpush1.bf16.msra.mxu0 0
        %574 = vmatprep.subr.bf16.mxu0 0
        %575 = vmatpush1.bf16.msra.mxu0 0
        %576 = vmatprep.subr.bf16.mxu0 0
        %577 = vmatpush1.bf16.msra.mxu0 0
        %578 = vmatprep.subr.bf16.mxu0 0
        %579 = vmatpush1.bf16.msra.mxu0 0
        %580 = vmatprep.mubr.bf16.mxu0 0
        %581 = vmatmul.mubr.bf16.gmra.mrb[0].mxu0 %v546
        %v582 = vpop.f32.mrb[0].mxu0
        %v583 = vadd.f32 0.0, %v582
        %v584 = vpop.f32.mrb[0].mxu0
        %v585 = vpop.f32.mrb[0].mxu0
        %v586 = vpop.f32.mrb[0].mxu0
        %587 = vdwg.mxu0
        %v590 = vunpack.c.l.b16 %v523
        %v591 = vunpack.c.l.b16 %v524
        %v592 = vpack.c.b16 %v591, %v590
        %v594 = vsel %vm363, %v592, 0
        %596 = vmatprep.subr.bf16.mxu0 %v526
        %597 = vmatpush1.bf16.msra.mxu0 %v525
        %598 = vmatprep.subr.bf16.mxu0 0
        %599 = vmatpush1.bf16.msra.mxu0 0
        %600 = vmatprep.subr.bf16.mxu0 0
        %601 = vmatpush1.bf16.msra.mxu0 0
        %602 = vmatprep.subr.bf16.mxu0 0
        %603 = vmatpush1.bf16.msra.mxu0 0
        %604 = vmatprep.subr.bf16.mxu0 0
        %605 = vmatpush1.bf16.msra.mxu0 0
        %606 = vmatprep.subr.bf16.mxu0 0
        %607 = vmatpush1.bf16.msra.mxu0 0
        %608 = vmatprep.subr.bf16.mxu0 0
        %609 = vmatpush1.bf16.msra.mxu0 0
        %610 = vmatprep.subr.bf16.mxu0 0
        %611 = vmatpush1.bf16.msra.mxu0 0
        %612 = vmatprep.subr.bf16.mxu0 0
        %613 = vmatpush1.bf16.msra.mxu0 0
        %614 = vmatprep.subr.bf16.mxu0 0
        %615 = vmatpush1.bf16.msra.mxu0 0
        %616 = vmatprep.subr.bf16.mxu0 0
        %617 = vmatpush1.bf16.msra.mxu0 0
        %618 = vmatprep.subr.bf16.mxu0 0
        %619 = vmatpush1.bf16.msra.mxu0 0
        %620 = vmatprep.subr.bf16.mxu0 0
        %621 = vmatpush1.bf16.msra.mxu0 0
        %622 = vmatprep.subr.bf16.mxu0 0
        %623 = vmatpush1.bf16.msra.mxu0 0
        %624 = vmatprep.subr.bf16.mxu0 0
        %625 = vmatpush1.bf16.msra.mxu0 0
        %626 = vmatprep.subr.bf16.mxu0 0
        %627 = vmatpush1.bf16.msra.mxu0 0
        %628 = vmatprep.mubr.bf16.mxu0 0
        %629 = vmatmul.mubr.bf16.gmra.mrb[0].mxu0 %v594
        %v630 = vpop.f32.mrb[0].mxu0
        %v631 = vadd.f32 %v583, %v630
        %v632 = vpop.f32.mrb[0].mxu0
        %v633 = vpop.f32.mrb[0].mxu0
        %v634 = vpop.f32.mrb[0].mxu0
        %635 = vdwg.mxu0
        %s636 = scalar_lea.vmem %s3, 16
        %v637 = vld [vmem:[%s636] sm:$0xff]
        %639 = vset.pattern.permute.xlu0 0
        %640 = vperm.xlu0 %639, %v637
        %v641 = vpop.permute.xlu0 %640
        %v643 = vadd.f32 %v631, %v641
        %v644 = vmax.f32 %v643, 0.0
        %645 = vst [vmem:[%s319] sm:$0xff] %v644
        %s646 = sand.u32 %s144, 1
        %s647 = scalar_lea.sflag [#allocation7], %s646
        %s648 = sand.u32 %s144, 1
        %s649 = smul.addr %s648, 8
        %s650 = scalar_lea.vmem [#allocation10], %s649
        // Predicated region
        $region94: #{tpu_custom_call.1} parent=72 // pred_check
          %p651 = pneg %p154
        $region95: #{tpu_custom_call.1} parent=72 // pred_check_branch
          %653 = sbr.rel (%p651) target = $region97
        $region96: #{tpu_custom_call.1} parent=72 // pred_region
          %s655 = ssub.s32 128, 128
          %656 = vsyncadd %s647, %s655
          %s657 = sadd.s32 %s27, %s26
          %s658 = smul.addr %s657, 128
          %s659 = scalar_lea.hbm %s4, %s658
          %s661 = sshll.u32 %s650, 4
          %s662 = int_to_ptr.vmem [resolvable:$true] %s661
          %664 = dma.vmem_to_hbm [thread:$0]  %s662, 128, %s659, %s647
        $region97: #{tpu_custom_call.1} parent=72 // pred_fallthru
          _
      $region73: #{tpu_custom_call.1} parent=5 // pred_fallthru
        _
      %p665 = scmp.le.s32.totalorder 2, %s17
      // Predicated region
      $region98: #{tpu_custom_call.1} parent=5 // pred_check
        %p666 = pneg %p665
      $region99: #{tpu_custom_call.1} parent=5 // pred_check_branch
        %668 = sbr.rel (%p666) target = $region101
      $region100: #{tpu_custom_call.1} parent=5 // pred_region
        %s669 = ssub.s32 %s17, 2
        // Predicated region
        $region102: #{tpu_custom_call.1} parent=100 // pred_check
          %p670 = pneg %p160
        $region103: #{tpu_custom_call.1} parent=100 // pred_check_branch
          %672 = sbr.rel (%p670) target = $region105
        $region104: #{tpu_custom_call.1} parent=100 // pred_region
          %s673 = sand.u32 %s145, 1
          %s674 = scalar_lea.sflag [#allocation7], %s673
          %s675 = sand.u32 %s145, 1
          %s676 = smul.addr %s675, 8
          %s677 = scalar_lea.vmem [#allocation10], %s676
          %678 = dma.done %s674, 128
        $region105: #{tpu_custom_call.1} parent=100 // pred_fallthru
          _
      $region101: #{tpu_custom_call.1} parent=5 // pred_fallthru
        _
    $region6: #{tpu_custom_call.1} parent=1 // loop_footer
      %s21 = sadd.s32 1, %s17
    $region7: #{tpu_custom_call.1} parent=1 // loop_footer_branch
      %16 = sbr.rel target = $region3
    $region8: #{tpu_custom_call.1} parent=1 // loop_exit
      _
    %679 = vsyncpa [#allocation6], 1
    %s680 = scalar_lea.sflag [#allocation6], 1
    %681 = vsyncpa %s680, 1
    %682 = vsyncpa [#allocation9], 1
    %683 = vsyncpa [#allocation7], 1
    %s684 = scalar_lea.sflag [#allocation7], 1
    %685 = vsyncpa %s684, 1

</llo_original>
